<compile_context>
chip_gen: v7x
topology: tpu7x:2x2x1
jax: 0.10.0
libtpu: 0.0.40
codegen_flags: <defaults>
</compile_context>

<pallas_src>
import functools

import jax
import jax.numpy as jnp
from jax.experimental import pallas as pl
from jax.experimental.pallas import tpu as pltpu


LANE = 128        # lane width: weight/output minor dims padded to this
SUBLANE = 16      # bf16 sublane packing: batch tiles are multiples of this


def _round_up(n, m):
    return ((n + m - 1) // m) * m


def _pad_axis(x, axis, target):
    pad = target - x.shape[axis]
    if pad == 0:
        return x
    widths = [(0, 0)] * x.ndim
    widths[axis] = (0, pad)
    return jnp.pad(x, widths)


def _default_act_dtype():
    """bf16 elementwise on chips with a bf16 VPU (v6e/v7x); f32 on v5e and older."""
    try:
        kind = jax.devices()[0].device_kind.lower()
    except Exception:
        return jnp.float32
    if any(tag in kind for tag in ("v2", "v3", "v4", "v5")):
        return jnp.float32
    return jnp.bfloat16


def dqn_kernel(x_ref, w1_ref, b1_ref, w2_ref, b2_ref, w3_ref, b3_ref, out_ref,
               *, act_dtype):
    """One batch tile of the 3-layer MLP (bf16 MXU operands, f32 accumulation)."""
    # Cast the f32 state tile to bf16 in VMEM (keeps HBM input traffic at f32 of the
    # raw state only; no separate wrapper-side cast pass).
    x = x_ref[...].astype(jnp.bfloat16)

    # fc1 + relu
    h1 = jnp.dot(x, w1_ref[...], preferred_element_type=jnp.float32)
    h1 = jnp.maximum(h1.astype(act_dtype) + b1_ref[...], 0).astype(jnp.bfloat16)

    # fc2 + relu
    h2 = jnp.dot(h1, w2_ref[...], preferred_element_type=jnp.float32)
    h2 = jnp.maximum(h2.astype(act_dtype) + b2_ref[...], 0).astype(jnp.bfloat16)

    # fc3 (Q-values; padded action columns are exactly zero). Store in bf16 to halve
    # the dominant HBM writeback; lanes stay dense -> unmasked vst.
    q = jnp.dot(h2, w3_ref[...], preferred_element_type=jnp.float32)
    out_ref[...] = (q + b3_ref[...]).astype(out_ref.dtype)


def prepare_params(params, elementwise_dtype=None):
    """Pad hidden/action dims to 128 lanes; weights -> bf16; biases -> elementwise dtype.

    Do this once per parameter update, not per forward call.
    """
    if elementwise_dtype is None:
        elementwise_dtype = _default_act_dtype()

    w1, b1 = params["w1"], params["b1"]
    w2, b2 = params["w2"], params["b2"]
    w3, b3 = params["w3"], params["b3"]

    h1p = _round_up(w1.shape[1], LANE)
    h2p = _round_up(w2.shape[1], LANE)
    nap = _round_up(w3.shape[1], LANE)

    return {
        "w1": _pad_axis(w1, 1, h1p).astype(jnp.bfloat16),
        "b1": _pad_axis(b1.reshape(1, -1), 1, h1p).astype(elementwise_dtype),
        "w2": _pad_axis(_pad_axis(w2, 0, h1p), 1, h2p).astype(jnp.bfloat16),
        "b2": _pad_axis(b2.reshape(1, -1), 1, h2p).astype(elementwise_dtype),
        "w3": _pad_axis(_pad_axis(w3, 0, h2p), 1, nap).astype(jnp.bfloat16),
        # Final bias stays f32: added to the f32 accumulator right before the bf16 store.
        "b3": _pad_axis(b3.reshape(1, -1), 1, nap).astype(jnp.float32),
    }


def deep_q_network_forward(state, prepared, n_actions, *, batch_tile=2048):
    """state: [B, input_dim] f32. prepared: output of prepare_params.

    Returns [B, n_actions] f32 Q-values (same semantics as the PyTorch forward).
    """
    B, d_in = state.shape
    h1p = prepared["w1"].shape[1]
    h2p = prepared["w2"].shape[1]
    nap = prepared["w3"].shape[1]
    act_dtype = prepared["b1"].dtype

    # Batch tile: multiple of 16 (bf16 output sublane pack), capped by batch_tile, and
    # chosen so the grid has >= 2 steps whenever B allows it (v7x megacore). No batch
    # padding: the ragged last block's out-of-range rows are masked on store.
    tb = min(batch_tile, _round_up(max(1, -(-B // 2)), SUBLANE))
    grid = (pl.cdiv(B, tb),)

    resident = lambda i: (0, 0)  # weights/biases: same block every step -> stay in VMEM

    q = pl.pallas_call(
        functools.partial(dqn_kernel, act_dtype=act_dtype),
        out_shape=jax.ShapeDtypeStruct((B, nap), jnp.bfloat16),
        grid=grid,
        in_specs=[
            pl.BlockSpec((tb, d_in), lambda i: (i, 0)),   # activations: tiled over batch
            pl.BlockSpec((d_in, h1p), resident),
            pl.BlockSpec((1, h1p), resident),
            pl.BlockSpec((h1p, h2p), resident),
            pl.BlockSpec((1, h2p), resident),
            pl.BlockSpec((h2p, nap), resident),
            pl.BlockSpec((1, nap), resident),
        ],
        out_specs=pl.BlockSpec((tb, nap), lambda i: (i, 0)),
        compiler_params=pltpu.CompilerParams(
            dimension_semantics=("parallel",),   # shard batch tiles across TCs (v7x)
        ),
    )(state, prepared["w1"], prepared["b1"], prepared["w2"], prepared["b2"],
      prepared["w3"], prepared["b3"])

    # Slice off lane padding and return f32 to match the PyTorch module's output dtype.
    return q[:, :n_actions].astype(jnp.float32)


def init_params(key, input_dim, fc1_dims, fc2_dims, n_actions):
    """Deterministic init mimicking torch.nn.Linear default U(-1/sqrt(fan_in), 1/sqrt(fan_in))."""
    ks = jax.random.split(key, 6)

    def linear(kw, kb, fan_in, fan_out):
        bound = 1.0 / jnp.sqrt(jnp.float32(fan_in))
        w = jax.random.uniform(kw, (fan_in, fan_out), jnp.float32, -bound, bound)
        b = jax.random.uniform(kb, (1, fan_out), jnp.float32, -bound, bound)
        return w, b

    w1, b1 = linear(ks[0], ks[1], input_dim, fc1_dims)
    w2, b2 = linear(ks[2], ks[3], fc1_dims, fc2_dims)
    w3, b3 = linear(ks[4], ks[5], fc2_dims, n_actions)
    return {"w1": w1, "b1": b1, "w2": w2, "b2": b2, "w3": w3, "b3": b3}


# TODO(synk): Adam optimizer / MSELoss / training step from the PyTorch module are not
# part of the forward pass and are intentionally not kernelized here.

if __name__ == "__main__":
    key = jax.random.PRNGKey(0)
    k_param, k_state = jax.random.split(key)

    # Small shapes consistent with DeepQNetwork(lr, input_dims=(32,), fc1_dims=64,
    # fc2_dims=32, n_actions=4), batch of 8 states.
    B, input_dim, fc1_dims, fc2_dims, n_actions = 8, 32, 64, 32, 4

    params = init_params(k_param, input_dim, fc1_dims, fc2_dims, n_actions)
    state = jax.random.normal(k_state, (B, input_dim), jnp.float32)

    prepared = prepare_params(params)
    actions = deep_q_network_forward(state, prepared, n_actions)
    jax.block_until_ready(actions)
    assert actions.shape == (B, n_actions)

    act_dtype = prepared["b1"].dtype

    # Reference 1: mimics the kernel numerics (bf16 matmul operands, f32 accumulation,
    # elementwise in act_dtype, bf16 output cast).
    xb = state.astype(jnp.bfloat16)
    w1b = params["w1"].astype(jnp.bfloat16)
    w2b = params["w2"].astype(jnp.bfloat16)
    w3b = params["w3"].astype(jnp.bfloat16)
    h1 = jnp.dot(xb, w1b, preferred_element_type=jnp.float32)
    h1 = jnp.maximum(h1.astype(act_dtype) + params["b1"].astype(act_dtype), 0).astype(jnp.bfloat16)
    h2 = jnp.dot(h1, w2b, preferred_element_type=jnp.float32)
    h2 = jnp.maximum(h2.astype(act_dtype) + params["b2"].astype(act_dtype), 0).astype(jnp.bfloat16)
    q_ref = jnp.dot(h2, w3b, preferred_element_type=jnp.float32) + params["b3"]
    ref_mimic = q_ref.astype(jnp.bfloat16).astype(jnp.float32)
    assert jnp.allclose(actions, ref_mimic, atol=2e-2, rtol=2e-2)

    # Reference 2: full-f32 PyTorch-equivalent forward (loose tolerance for bf16 path).
    h1f = jnp.maximum(state @ params["w1"] + params["b1"], 0.0)
    h2f = jnp.maximum(h1f @ params["w2"] + params["b2"], 0.0)
    ref_f32 = h2f @ params["w3"] + params["b3"]
    assert jnp.allclose(actions, ref_f32, atol=6e-2, rtol=6e-2)

    print("KERNEL_OK")
</pallas_src>

<mosaic_0001>
module attributes {stable_mosaic.version = 11 : i64} {
  func.func @dqn_kernel(%arg0: i32, %arg1: memref<16x32xf32, #tpu.memory_space<vmem>>, %arg2: memref<32x128xbf16, #tpu.memory_space<vmem>>, %arg3: memref<1x128xbf16, #tpu.memory_space<vmem>>, %arg4: memref<128x128xbf16, #tpu.memory_space<vmem>>, %arg5: memref<1x128xbf16, #tpu.memory_space<vmem>>, %arg6: memref<128x128xbf16, #tpu.memory_space<vmem>>, %arg7: memref<1x128xf32, #tpu.memory_space<vmem>>, %arg8: memref<16x128xbf16, #tpu.memory_space<vmem>>) attributes {dimension_semantics = [#tpu.dimension_semantics<parallel>], iteration_bounds = array<i64: 1>, scalar_prefetch = 0 : i64, scratch_operands = 0 : i64, tpu.core_type = #tpu.core_type<tc>, window_params = [{transform_indices = @transform_0, window_bounds = array<i64: 16, 32>}, {pipeline_mode = #tpu.pipeline_mode<synchronous>, transform_indices = @transform_1, window_bounds = array<i64: 32, 128>}, {pipeline_mode = #tpu.pipeline_mode<synchronous>, transform_indices = @transform_2, window_bounds = array<i64: 1, 128>}, {pipeline_mode = #tpu.pipeline_mode<synchronous>, transform_indices = @transform_3, window_bounds = array<i64: 128, 128>}, {pipeline_mode = #tpu.pipeline_mode<synchronous>, transform_indices = @transform_4, window_bounds = array<i64: 1, 128>}, {pipeline_mode = #tpu.pipeline_mode<synchronous>, transform_indices = @transform_5, window_bounds = array<i64: 128, 128>}, {pipeline_mode = #tpu.pipeline_mode<synchronous>, transform_indices = @transform_6, window_bounds = array<i64: 1, 128>}, {transform_indices = @transform_7, window_bounds = array<i64: 16, 128>}]} {
    %c0 = arith.constant 0 : index
    %c0_0 = arith.constant 0 : index
    %0 = vector.load %arg1[%c0, %c0_0] : memref<16x32xf32, #tpu.memory_space<vmem>>, vector<16x32xf32>
    %1 = arith.truncf %0 : vector<16x32xf32> to vector<16x32xbf16>
    %c0_1 = arith.constant 0 : index
    %c0_2 = arith.constant 0 : index
    %2 = vector.load %arg2[%c0_1, %c0_2] : memref<32x128xbf16, #tpu.memory_space<vmem>>, vector<32x128xbf16>
    %cst = arith.constant dense<0.000000e+00> : vector<16x128xf32>
    %3 = tpu.matmul %1, %2, %cst {dimension_numbers = #tpu.dot_dimension_numbers<[1], [0], [0], [1], [0, 0, 1, 1], [], []>} : vector<16x32xbf16>, vector<32x128xbf16>, vector<16x128xf32> -> vector<16x128xf32>
    %4 = arith.truncf %3 : vector<16x128xf32> to vector<16x128xbf16>
    %c0_3 = arith.constant 0 : index
    %c0_4 = arith.constant 0 : index
    %5 = vector.load %arg3[%c0_3, %c0_4] : memref<1x128xbf16, #tpu.memory_space<vmem>>, vector<1x128xbf16>
    %6 = vector.broadcast %5 : vector<1x128xbf16> to vector<16x128xbf16>
    %7 = arith.addf %4, %6 : vector<16x128xbf16>
    %cst_5 = arith.constant 0.000000e+00 : bf16
    %8 = vector.broadcast %cst_5 : bf16 to vector<16x128xbf16>
    %9 = arith.maximumf %7, %8 : vector<16x128xbf16>
    %c0_6 = arith.constant 0 : index
    %c0_7 = arith.constant 0 : index
    %10 = vector.load %arg4[%c0_6, %c0_7] : memref<128x128xbf16, #tpu.memory_space<vmem>>, vector<128x128xbf16>
    %cst_8 = arith.constant dense<0.000000e+00> : vector<16x128xf32>
    %11 = tpu.matmul %9, %10, %cst_8 {dimension_numbers = #tpu.dot_dimension_numbers<[1], [0], [0], [1], [0, 0, 1, 1], [], []>} : vector<16x128xbf16>, vector<128x128xbf16>, vector<16x128xf32> -> vector<16x128xf32>
    %12 = arith.truncf %11 : vector<16x128xf32> to vector<16x128xbf16>
    %c0_9 = arith.constant 0 : index
    %c0_10 = arith.constant 0 : index
    %13 = vector.load %arg5[%c0_9, %c0_10] : memref<1x128xbf16, #tpu.memory_space<vmem>>, vector<1x128xbf16>
    %14 = vector.broadcast %13 : vector<1x128xbf16> to vector<16x128xbf16>
    %15 = arith.addf %12, %14 : vector<16x128xbf16>
    %cst_11 = arith.constant 0.000000e+00 : bf16
    %16 = vector.broadcast %cst_11 : bf16 to vector<16x128xbf16>
    %17 = arith.maximumf %15, %16 : vector<16x128xbf16>
    %c0_12 = arith.constant 0 : index
    %c0_13 = arith.constant 0 : index
    %18 = vector.load %arg6[%c0_12, %c0_13] : memref<128x128xbf16, #tpu.memory_space<vmem>>, vector<128x128xbf16>
    %cst_14 = arith.constant dense<0.000000e+00> : vector<16x128xf32>
    %19 = tpu.matmul %17, %18, %cst_14 {dimension_numbers = #tpu.dot_dimension_numbers<[1], [0], [0], [1], [0, 0, 1, 1], [], []>} : vector<16x128xbf16>, vector<128x128xbf16>, vector<16x128xf32> -> vector<16x128xf32>
    %c0_15 = arith.constant 0 : index
    %c0_16 = arith.constant 0 : index
    %20 = vector.load %arg7[%c0_15, %c0_16] : memref<1x128xf32, #tpu.memory_space<vmem>>, vector<1x128xf32>
    %21 = vector.broadcast %20 : vector<1x128xf32> to vector<16x128xf32>
    %22 = arith.addf %19, %21 : vector<16x128xf32>
    %23 = arith.truncf %22 : vector<16x128xf32> to vector<16x128xbf16>
    %c0_17 = arith.constant 0 : index
    %c0_18 = arith.constant 0 : index
    %24 = vector.load %arg8[%c0_17, %c0_18] : memref<16x128xbf16, #tpu.memory_space<vmem>>, vector<16x128xbf16>
    tpu.vector_store %arg8[%c0_17, %c0_18], %23 {strides = array<i32>} : memref<16x128xbf16, #tpu.memory_space<vmem>>, vector<16x128xbf16>,
    return
  }
  func.func @transform_0(%arg0: i32) -> (i32, i32) {
    %c0_i32 = arith.constant 0 : i32
    %c0_i32_0 = arith.constant 0 : i32
    return %arg0, %c0_i32 : i32, i32
  }
  func.func @transform_1(%arg0: i32) -> (i32, i32) {
    %c0_i32 = arith.constant 0 : i32
    %c0_i32_0 = arith.constant 0 : i32
    %c0_i32_1 = arith.constant 0 : i32
    return %c0_i32, %c0_i32_0 : i32, i32
  }
  func.func @transform_2(%arg0: i32) -> (i32, i32) {
    %c0_i32 = arith.constant 0 : i32
    %c0_i32_0 = arith.constant 0 : i32
    %c0_i32_1 = arith.constant 0 : i32
    return %c0_i32, %c0_i32_0 : i32, i32
  }
  func.func @transform_3(%arg0: i32) -> (i32, i32) {
    %c0_i32 = arith.constant 0 : i32
    %c0_i32_0 = arith.constant 0 : i32
    %c0_i32_1 = arith.constant 0 : i32
    return %c0_i32, %c0_i32_0 : i32, i32
  }
  func.func @transform_4(%arg0: i32) -> (i32, i32) {
    %c0_i32 = arith.constant 0 : i32
    %c0_i32_0 = arith.constant 0 : i32
    %c0_i32_1 = arith.constant 0 : i32
    return %c0_i32, %c0_i32_0 : i32, i32
  }
  func.func @transform_5(%arg0: i32) -> (i32, i32) {
    %c0_i32 = arith.constant 0 : i32
    %c0_i32_0 = arith.constant 0 : i32
    %c0_i32_1 = arith.constant 0 : i32
    return %c0_i32, %c0_i32_0 : i32, i32
  }
  func.func @transform_6(%arg0: i32) -> (i32, i32) {
    %c0_i32 = arith.constant 0 : i32
    %c0_i32_0 = arith.constant 0 : i32
    %c0_i32_1 = arith.constant 0 : i32
    return %c0_i32, %c0_i32_0 : i32, i32
  }
  func.func @transform_7(%arg0: i32) -> (i32, i32) {
    %c0_i32 = arith.constant 0 : i32
    %c0_i32_0 = arith.constant 0 : i32
    return %arg0, %c0_i32 : i32, i32
  }
}

</mosaic_0001>

<llo_original>
// kernel: tpu_custom_call.1
$region0: #{tpu_custom_call.1}
  #allocation0 [shape = 'u32[]', space=smem, size = 0x4, offset = 0x4, fixed_abs, tag = 'smem constant byte address 0x4 - core index']
  #allocation1 [shape = 'u32[144,128]{1,0:T(1,128)}', space=vmem, size = 0x12000, scoped, tag = 'internal scratch']
  %s0 = inlined_call_operand.hbm [shape: f32[8,32], index: 0, kind: input, shape index: {}]
  %s1 = inlined_call_operand.hbm [shape: bf16[32,128], index: 1, kind: input, shape index: {}]
  %s2 = inlined_call_operand.vmem [shape: bf16[1,128], index: 2, kind: input, shape index: {}]
  %s3 = inlined_call_operand.hbm [shape: bf16[128,128], index: 3, kind: input, shape index: {}]
  %s4 = inlined_call_operand.vmem [shape: bf16[1,128], index: 4, kind: input, shape index: {}]
  %s5 = inlined_call_operand.hbm [shape: bf16[128,128], index: 5, kind: input, shape index: {}]
  %s6 = inlined_call_operand.vmem [shape: f32[1,128], index: 6, kind: input, shape index: {}]
  %s7 = inlined_call_operand.hbm [shape: bf16[8,128], index: 7, kind: output, shape index: {}]
  %s8 = sld [smem:[#allocation0]]
  $region54: #{tpu_custom_call.1} parent=0
    _
  %s10 = ssub.s32 1, %s8
  %s11 = scalar_select 0, %s10, %s8
  $region1: #{tpu_custom_call.1} parent=0
    #allocation2 [shape = 'u8[8192]{0}', space=vmem, size = 0x2000, scoped, tag = 'input window, operand 0, single buffered']
    #allocation3 [shape = 's32[1]{0}', space=sflag, size = 0x4, scoped, tag = 'scoped memory for tpu_custom_call.1']
    #allocation4 [shape = 's32[1]{0}', space=sflag, size = 0x4, scoped, tag = 'scoped memory for tpu_custom_call.1']
    #allocation5 [shape = 'u8[8192]{0}', space=vmem, size = 0x2000, scoped, tag = 'input window, operand 1, single buffered']
    #allocation6 [shape = 's32[1]{0}', space=sflag, size = 0x4, scoped, tag = 'scoped memory for tpu_custom_call.1']
    #allocation7 [shape = 'u8[32768]{0}', space=vmem, size = 0x8000, scoped, tag = 'input window, operand 3, single buffered']
    #allocation8 [shape = 'u8[32768]{0}', space=vmem, size = 0x8000, scoped, tag = 'input window, operand 5, single buffered']
    #allocation9 [shape = 's32[1]{0}', space=sflag, size = 0x4, scoped, tag = 'scoped memory for tpu_custom_call.1']
    #allocation10 [shape = 'u8[4096]{0}', space=vmem, size = 0x1000, scoped, tag = 'output window, operand 0, single buffered']
    %12 = vsyncpa [#allocation3], 0
    %13 = vsyncpa [#allocation6], 0
    %14 = vsyncpa [#allocation9], 0
    %15 = vsyncpa [#allocation4], 0
    // Predicated region
    $region2: #{tpu_custom_call.1} parent=1 // pred_check
      _
    $region3: #{tpu_custom_call.1} parent=1 // pred_check_branch
      %17 = sbr.rel (0) target = $region5
    $region4: #{tpu_custom_call.1} parent=1 // pred_region
      %s19 = ssub.s32 256, 128
      %20 = vsyncadd [#allocation3], %s19
      %s21 = sshll.u32 [#allocation2], 4
      %s22 = int_to_ptr.vmem [resolvable:$true] %s21
      %27 = dma.hbm_to_vmem [thread:$0]  %s0, 128, %s22, [#allocation3], 128, 128, 8
    $region5: #{tpu_custom_call.1} parent=1 // pred_fallthru
      _
    // Predicated region
    $region6: #{tpu_custom_call.1} parent=1 // pred_check
      _
    $region7: #{tpu_custom_call.1} parent=1 // pred_check_branch
      %29 = sbr.rel (0) target = $region9
    $region8: #{tpu_custom_call.1} parent=1 // pred_region
      %s31 = ssub.s32 256, 256
      %32 = vsyncadd [#allocation6], %s31
      %s33 = sshll.u32 [#allocation5], 4
      %s34 = int_to_ptr.vmem [resolvable:$true] %s33
      %39 = dma.hbm_to_vmem [thread:$0]  %s1, 256, %s34, [#allocation6], 64, 64, 4
    $region9: #{tpu_custom_call.1} parent=1 // pred_fallthru
      _
    // Predicated region
    $region10: #{tpu_custom_call.1} parent=1 // pred_check
      _
    $region11: #{tpu_custom_call.1} parent=1 // pred_check_branch
      %41 = sbr.rel (0) target = $region13
    $region12: #{tpu_custom_call.1} parent=1 // pred_region
      _
    $region13: #{tpu_custom_call.1} parent=1 // pred_fallthru
      _
    // Predicated region
    $region14: #{tpu_custom_call.1} parent=1 // pred_check
      _
    $region15: #{tpu_custom_call.1} parent=1 // pred_check_branch
      %43 = sbr.rel (0) target = $region17
    $region16: #{tpu_custom_call.1} parent=1 // pred_region
      %s45 = ssub.s32 1024, 1024
      %46 = vsyncadd [#allocation6], %s45
      %s47 = sshll.u32 [#allocation7], 4
      %s48 = int_to_ptr.vmem [resolvable:$true] %s47
      %53 = dma.hbm_to_vmem [thread:$0]  %s3, 1024, %s48, [#allocation6], 64, 64, 4
    $region17: #{tpu_custom_call.1} parent=1 // pred_fallthru
      _
    // Predicated region
    $region18: #{tpu_custom_call.1} parent=1 // pred_check
      _
    $region19: #{tpu_custom_call.1} parent=1 // pred_check_branch
      %55 = sbr.rel (0) target = $region21
    $region20: #{tpu_custom_call.1} parent=1 // pred_region
      _
    $region21: #{tpu_custom_call.1} parent=1 // pred_fallthru
      _
    // Predicated region
    $region22: #{tpu_custom_call.1} parent=1 // pred_check
      _
    $region23: #{tpu_custom_call.1} parent=1 // pred_check_branch
      %57 = sbr.rel (0) target = $region25
    $region24: #{tpu_custom_call.1} parent=1 // pred_region
      %s59 = ssub.s32 1024, 1024
      %60 = vsyncadd [#allocation9], %s59
      %s61 = sshll.u32 [#allocation8], 4
      %s62 = int_to_ptr.vmem [resolvable:$true] %s61
      %67 = dma.hbm_to_vmem [thread:$0]  %s5, 1024, %s62, [#allocation9], 64, 64, 4
    $region25: #{tpu_custom_call.1} parent=1 // pred_fallthru
      _
    // Predicated region
    $region26: #{tpu_custom_call.1} parent=1 // pred_check
      _
    $region27: #{tpu_custom_call.1} parent=1 // pred_check_branch
      %69 = sbr.rel (0) target = $region29
    $region28: #{tpu_custom_call.1} parent=1 // pred_region
      _
    $region29: #{tpu_custom_call.1} parent=1 // pred_fallthru
      _
    // Predicated region
    $region30: #{tpu_custom_call.1} parent=1 // pred_check
      _
    $region31: #{tpu_custom_call.1} parent=1 // pred_check_branch
      %71 = sbr.rel (0) target = $region33
    $region32: #{tpu_custom_call.1} parent=1 // pred_region
      %72 = dma.done [#allocation3], 256
    $region33: #{tpu_custom_call.1} parent=1 // pred_fallthru
      _
    // Predicated region
    $region34: #{tpu_custom_call.1} parent=1 // pred_check
      _
    $region35: #{tpu_custom_call.1} parent=1 // pred_check_branch
      %74 = sbr.rel (0) target = $region37
    $region36: #{tpu_custom_call.1} parent=1 // pred_region
      %75 = dma.done [#allocation6], 256
    $region37: #{tpu_custom_call.1} parent=1 // pred_fallthru
      _
    // Predicated region
    $region38: #{tpu_custom_call.1} parent=1 // pred_check
      _
    $region39: #{tpu_custom_call.1} parent=1 // pred_check_branch
      %77 = sbr.rel (0) target = $region41
    $region40: #{tpu_custom_call.1} parent=1 // pred_region
      %78 = dma.done [#allocation6], 1024
    $region41: #{tpu_custom_call.1} parent=1 // pred_fallthru
      _
    // Predicated region
    $region42: #{tpu_custom_call.1} parent=1 // pred_check
      _
    $region43: #{tpu_custom_call.1} parent=1 // pred_check_branch
      %80 = sbr.rel (0) target = $region45
    $region44: #{tpu_custom_call.1} parent=1 // pred_region
      %81 = dma.done [#allocation9], 1024
    $region45: #{tpu_custom_call.1} parent=1 // pred_fallthru
      _
    %v83 = vld [vmem:[#allocation2] sm:$0xff]
    %v84 = vld [vmem:[#allocation2 + $0x8] sm:$0xff]
    %v85 = vpack.c.bf16 %v84, %v83
    %v86 = vld [vmem:[#allocation5] sm:$0xf]
    %v87 = vld [vmem:[#allocation5 + $0x4] sm:$0xf]
    %v88 = vld [vmem:[#allocation5 + $0x8] sm:$0xf]
    %v89 = vld [vmem:[#allocation5 + $0xc] sm:$0xf]
    %v94 = vunpack.c.l.b16 %v86
    %v95 = vunpack.c.l.b16 %v87
    %v96 = vunpack.c.l.b16 %v88
    %v97 = vunpack.c.l.b16 %v89
    %v98 = vpack.c.b16 %v95, %v94
    %v99 = vpack.c.b16 %v97, %v96
    %vm102 = vcmask 261120
    %v104 = vsel %vm102, %v85, 0
    %106 = vmatprep.subr.bf16.mxu0 0
    %107 = vmatpush1.bf16.msra.mxu0 %v98
    %108 = vmatprep.subr.bf16.mxu0 0
    %109 = vmatpush1.bf16.msra.mxu0 %v99
    %110 = vmatprep.subr.bf16.mxu0 0
    %111 = vmatpush1.bf16.msra.mxu0 0
    %112 = vmatprep.subr.bf16.mxu0 0
    %113 = vmatpush1.bf16.msra.mxu0 0
    %114 = vmatprep.subr.bf16.mxu0 0
    %115 = vmatpush1.bf16.msra.mxu0 0
    %116 = vmatprep.subr.bf16.mxu0 0
    %117 = vmatpush1.bf16.msra.mxu0 0
    %118 = vmatprep.subr.bf16.mxu0 0
    %119 = vmatpush1.bf16.msra.mxu0 0
    %120 = vmatprep.subr.bf16.mxu0 0
    %121 = vmatpush1.bf16.msra.mxu0 0
    %122 = vmatprep.subr.bf16.mxu0 0
    %123 = vmatpush1.bf16.msra.mxu0 0
    %124 = vmatprep.subr.bf16.mxu0 0
    %125 = vmatpush1.bf16.msra.mxu0 0
    %126 = vmatprep.subr.bf16.mxu0 0
    %127 = vmatpush1.bf16.msra.mxu0 0
    %128 = vmatprep.subr.bf16.mxu0 0
    %129 = vmatpush1.bf16.msra.mxu0 0
    %130 = vmatprep.subr.bf16.mxu0 0
    %131 = vmatpush1.bf16.msra.mxu0 0
    %132 = vmatprep.subr.bf16.mxu0 0
    %133 = vmatpush1.bf16.msra.mxu0 0
    %134 = vmatprep.subr.bf16.mxu0 0
    %135 = vmatpush1.bf16.msra.mxu0 0
    %136 = vmatprep.subr.bf16.mxu0 0
    %137 = vmatpush1.bf16.msra.mxu0 0
    %138 = vmatprep.mubr.bf16.mxu0 0
    %139 = vmatmul.mubr.bf16.gmra.mrb[0].mxu0 %v104
    %v140 = vpop.f32.mrb[0].mxu0
    %v141 = vadd.f32 0.0, %v140
    %v142 = vpop.f32.mrb[0].mxu0
    %v143 = vpop.f32.mrb[0].mxu0
    %v144 = vadd.f32 0.0, %v143
    %v145 = vpop.f32.mrb[0].mxu0
    %146 = vdwg.mxu0
    %v147 = vpack.c.bf16 %v144, %v141
    %v148 = vld [vmem:[%s2] sm:$0x1]
    %v150 = vpack.i.b16 %v148, %v148
    %v152 = vlaneseq
    %v153 = vshrl.u32 %v152, 7
    %v154 = vsub.s32 0, %v153
    %v155 = vrot.slane %v150, %v154
    %v156 = vadd.bf16 %v147, %v155
    %v157 = vmax.bf16 %v156, 0
    %v158 = vld [vmem:[#allocation7] sm:$0xf]
    %v159 = vld [vmem:[#allocation7 + $0x4] sm:$0xf]
    %v160 = vld [vmem:[#allocation7 + $0x8] sm:$0xf]
    %v161 = vld [vmem:[#allocation7 + $0xc] sm:$0xf]
    %v162 = vld [vmem:[#allocation7 + $0x10] sm:$0xf]
    %v163 = vld [vmem:[#allocation7 + $0x14] sm:$0xf]
    %v164 = vld [vmem:[#allocation7 + $0x18] sm:$0xf]
    %v165 = vld [vmem:[#allocation7 + $0x1c] sm:$0xf]
    %v166 = vld [vmem:[#allocation7 + $0x20] sm:$0xf]
    %v167 = vld [vmem:[#allocation7 + $0x24] sm:$0xf]
    %v168 = vld [vmem:[#allocation7 + $0x28] sm:$0xf]
    %v169 = vld [vmem:[#allocation7 + $0x2c] sm:$0xf]
    %v170 = vld [vmem:[#allocation7 + $0x30] sm:$0xf]
    %v171 = vld [vmem:[#allocation7 + $0x34] sm:$0xf]
    %v172 = vld [vmem:[#allocation7 + $0x38] sm:$0xf]
    %v173 = vld [vmem:[#allocation7 + $0x3c] sm:$0xf]
    %v190 = vunpack.c.l.b16 %v158
    %v191 = vunpack.c.l.b16 %v159
    %v192 = vunpack.c.l.b16 %v160
    %v193 = vunpack.c.l.b16 %v161
    %v194 = vunpack.c.l.b16 %v162
    %v195 = vunpack.c.l.b16 %v163
    %v196 = vunpack.c.l.b16 %v164
    %v197 = vunpack.c.l.b16 %v165
    %v198 = vunpack.c.l.b16 %v166
    %v199 = vunpack.c.l.b16 %v167
    %v200 = vunpack.c.l.b16 %v168
    %v201 = vunpack.c.l.b16 %v169
    %v202 = vunpack.c.l.b16 %v170
    %v203 = vunpack.c.l.b16 %v171
    %v204 = vunpack.c.l.b16 %v172
    %v205 = vunpack.c.l.b16 %v173
    %v206 = vpack.c.b16 %v191, %v190
    %v207 = vpack.c.b16 %v193, %v192
    %v208 = vpack.c.b16 %v195, %v194
    %v209 = vpack.c.b16 %v197, %v196
    %v210 = vpack.c.b16 %v199, %v198
    %v211 = vpack.c.b16 %v201, %v200
    %v212 = vpack.c.b16 %v203, %v202
    %v213 = vpack.c.b16 %v205, %v204
    %222 = vmatprep.subr.bf16.mxu0 0
    %223 = vmatpush1.bf16.msra.mxu0 %v206
    %224 = vmatprep.subr.bf16.mxu0 0
    %225 = vmatpush1.bf16.msra.mxu0 %v207
    %226 = vmatprep.subr.bf16.mxu0 0
    %227 = vmatpush1.bf16.msra.mxu0 %v208
    %228 = vmatprep.subr.bf16.mxu0 0
    %229 = vmatpush1.bf16.msra.mxu0 %v209
    %230 = vmatprep.subr.bf16.mxu0 0
    %231 = vmatpush1.bf16.msra.mxu0 %v210
    %232 = vmatprep.subr.bf16.mxu0 0
    %233 = vmatpush1.bf16.msra.mxu0 %v211
    %234 = vmatprep.subr.bf16.mxu0 0
    %235 = vmatpush1.bf16.msra.mxu0 %v212
    %236 = vmatprep.subr.bf16.mxu0 0
    %237 = vmatpush1.bf16.msra.mxu0 %v213
    %238 = vmatprep.subr.bf16.mxu0 0
    %239 = vmatpush1.bf16.msra.mxu0 0
    %240 = vmatprep.subr.bf16.mxu0 0
    %241 = vmatpush1.bf16.msra.mxu0 0
    %242 = vmatprep.subr.bf16.mxu0 0
    %243 = vmatpush1.bf16.msra.mxu0 0
    %244 = vmatprep.subr.bf16.mxu0 0
    %245 = vmatpush1.bf16.msra.mxu0 0
    %246 = vmatprep.subr.bf16.mxu0 0
    %247 = vmatpush1.bf16.msra.mxu0 0
    %248 = vmatprep.subr.bf16.mxu0 0
    %249 = vmatpush1.bf16.msra.mxu0 0
    %250 = vmatprep.subr.bf16.mxu0 0
    %251 = vmatpush1.bf16.msra.mxu0 0
    %252 = vmatprep.subr.bf16.mxu0 0
    %253 = vmatpush1.bf16.msra.mxu0 0
    %254 = vmatprep.mubr.bf16.mxu0 0
    %255 = vmatmul.mubr.bf16.gmra.mrb[0].mxu0 %v157
    %v256 = vpop.f32.mrb[0].mxu0
    %v257 = vadd.f32 0.0, %v256
    %v258 = vpop.f32.mrb[0].mxu0
    %v259 = vpop.f32.mrb[0].mxu0
    %v260 = vadd.f32 0.0, %v259
    %v261 = vpop.f32.mrb[0].mxu0
    %262 = vdwg.mxu0
    %v263 = vpack.c.bf16 %v260, %v257
    %v264 = vld [vmem:[%s4] sm:$0x1]
    %v266 = vpack.i.b16 %v264, %v264
    %v268 = vlaneseq
    %v269 = vshrl.u32 %v268, 7
    %v270 = vsub.s32 0, %v269
    %v271 = vrot.slane %v266, %v270
    %v272 = vadd.bf16 %v263, %v271
    %v273 = vmax.bf16 %v272, 0
    %v274 = vld [vmem:[#allocation8] sm:$0xf]
    %v275 = vld [vmem:[#allocation8 + $0x4] sm:$0xf]
    %v276 = vld [vmem:[#allocation8 + $0x8] sm:$0xf]
    %v277 = vld [vmem:[#allocation8 + $0xc] sm:$0xf]
    %v278 = vld [vmem:[#allocation8 + $0x10] sm:$0xf]
    %v279 = vld [vmem:[#allocation8 + $0x14] sm:$0xf]
    %v280 = vld [vmem:[#allocation8 + $0x18] sm:$0xf]
    %v281 = vld [vmem:[#allocation8 + $0x1c] sm:$0xf]
    %v282 = vld [vmem:[#allocation8 + $0x20] sm:$0xf]
    %v283 = vld [vmem:[#allocation8 + $0x24] sm:$0xf]
    %v284 = vld [vmem:[#allocation8 + $0x28] sm:$0xf]
    %v285 = vld [vmem:[#allocation8 + $0x2c] sm:$0xf]
    %v286 = vld [vmem:[#allocation8 + $0x30] sm:$0xf]
    %v287 = vld [vmem:[#allocation8 + $0x34] sm:$0xf]
    %v288 = vld [vmem:[#allocation8 + $0x38] sm:$0xf]
    %v289 = vld [vmem:[#allocation8 + $0x3c] sm:$0xf]
    %v290 = vld [vmem:[%s6] sm:$0x1]
    %v292 = vlaneseq
    %v293 = vshrl.u32 %v292, 7
    %v294 = vsub.s32 0, %v293
    %v295 = vrot.slane %v290, %v294
    %v313 = vunpack.c.l.b16 %v274
    %v314 = vunpack.c.l.b16 %v275
    %v315 = vunpack.c.l.b16 %v276
    %v316 = vunpack.c.l.b16 %v277
    %v317 = vunpack.c.l.b16 %v278
    %v318 = vunpack.c.l.b16 %v279
    %v319 = vunpack.c.l.b16 %v280
    %v320 = vunpack.c.l.b16 %v281
    %v321 = vunpack.c.l.b16 %v282
    %v322 = vunpack.c.l.b16 %v283
    %v323 = vunpack.c.l.b16 %v284
    %v324 = vunpack.c.l.b16 %v285
    %v325 = vunpack.c.l.b16 %v286
    %v326 = vunpack.c.l.b16 %v287
    %v327 = vunpack.c.l.b16 %v288
    %v328 = vunpack.c.l.b16 %v289
    %v329 = vpack.c.b16 %v314, %v313
    %v330 = vpack.c.b16 %v316, %v315
    %v331 = vpack.c.b16 %v318, %v317
    %v332 = vpack.c.b16 %v320, %v319
    %v333 = vpack.c.b16 %v322, %v321
    %v334 = vpack.c.b16 %v324, %v323
    %v335 = vpack.c.b16 %v326, %v325
    %v336 = vpack.c.b16 %v328, %v327
    %345 = vmatprep.subr.bf16.mxu0 0
    %346 = vmatpush1.bf16.msra.mxu0 %v329
    %347 = vmatprep.subr.bf16.mxu0 0
    %348 = vmatpush1.bf16.msra.mxu0 %v330
    %349 = vmatprep.subr.bf16.mxu0 0
    %350 = vmatpush1.bf16.msra.mxu0 %v331
    %351 = vmatprep.subr.bf16.mxu0 0
    %352 = vmatpush1.bf16.msra.mxu0 %v332
    %353 = vmatprep.subr.bf16.mxu0 0
    %354 = vmatpush1.bf16.msra.mxu0 %v333
    %355 = vmatprep.subr.bf16.mxu0 0
    %356 = vmatpush1.bf16.msra.mxu0 %v334
    %357 = vmatprep.subr.bf16.mxu0 0
    %358 = vmatpush1.bf16.msra.mxu0 %v335
    %359 = vmatprep.subr.bf16.mxu0 0
    %360 = vmatpush1.bf16.msra.mxu0 %v336
    %361 = vmatprep.subr.bf16.mxu0 0
    %362 = vmatpush1.bf16.msra.mxu0 0
    %363 = vmatprep.subr.bf16.mxu0 0
    %364 = vmatpush1.bf16.msra.mxu0 0
    %365 = vmatprep.subr.bf16.mxu0 0
    %366 = vmatpush1.bf16.msra.mxu0 0
    %367 = vmatprep.subr.bf16.mxu0 0
    %368 = vmatpush1.bf16.msra.mxu0 0
    %369 = vmatprep.subr.bf16.mxu0 0
    %370 = vmatpush1.bf16.msra.mxu0 0
    %371 = vmatprep.subr.bf16.mxu0 0
    %372 = vmatpush1.bf16.msra.mxu0 0
    %373 = vmatprep.subr.bf16.mxu0 0
    %374 = vmatpush1.bf16.msra.mxu0 0
    %375 = vmatprep.subr.bf16.mxu0 0
    %376 = vmatpush1.bf16.msra.mxu0 0
    %377 = vmatprep.mubr.bf16.mxu0 0
    %378 = vmatmul.mubr.bf16.gmra.mrb[0].mxu0 %v273
    %v379 = vpop.f32.mrb[0].mxu0
    %v380 = vadd.f32 %v295, %v379
    %v381 = vpop.f32.mrb[0].mxu0
    %v382 = vpop.f32.mrb[0].mxu0
    %v383 = vadd.f32 %v295, %v382
    %v384 = vpop.f32.mrb[0].mxu0
    %385 = vdwg.mxu0
    %v386 = vpack.c.bf16 %v383, %v380
    %v388 = vunpack.c.l.b16 %v386
    %v389 = vunpack.c.h.b16 %v386
    %v390 = vpack.c.b16 %v388, %v388
    %v391 = vpack.c.b16 %v389, %v389
    %394 = vst [vmem:[#allocation10] sm:$0xf] %v390
    %395 = vst [vmem:[#allocation10 + $0x4] sm:$0xf] %v391
    // Predicated region
    $region46: #{tpu_custom_call.1} parent=1 // pred_check
      _
    $region47: #{tpu_custom_call.1} parent=1 // pred_check_branch
      %397 = sbr.rel (0) target = $region49
    $region48: #{tpu_custom_call.1} parent=1 // pred_region
      %s399 = ssub.s32 128, 64
      %400 = vsyncadd [#allocation4], %s399
      %s401 = sshll.u32 [#allocation10], 4
      %s402 = int_to_ptr.vmem [resolvable:$true] %s401
      %407 = dma.vmem_to_hbm [thread:$0]  %s402, 64, %s7, [#allocation4], 64, 64, 4
    $region49: #{tpu_custom_call.1} parent=1 // pred_fallthru
      _
    // Predicated region
    $region50: #{tpu_custom_call.1} parent=1 // pred_check
      _
    $region51: #{tpu_custom_call.1} parent=1 // pred_check_branch
      %409 = sbr.rel (0) target = $region53
    $region52: #{tpu_custom_call.1} parent=1 // pred_region
      %410 = dma.done [#allocation4], 128
    $region53: #{tpu_custom_call.1} parent=1 // pred_fallthru
      _
    %411 = vsyncpa [#allocation3], 1
    %412 = vsyncpa [#allocation6], 1
    %413 = vsyncpa [#allocation9], 1
    %414 = vsyncpa [#allocation4], 1

</llo_original>
